<compile_context>
chip_gen: v5e
topology: v5e:2x2
jax: 0.10.0
libtpu: 0.0.40
codegen_flags: <defaults>
</compile_context>

<pallas_src>
import functools

import jax
import jax.numpy as jnp
from jax.experimental import pallas as pl
from jax.experimental.pallas import tpu as pltpu


def _round_up(x, m):
    return ((x + m - 1) // m) * m


def _mlp3_kernel(x_ref, w1_ref, b1_ref, w2_ref, b2_ref, w3_ref, b3_ref, o_ref):
    x = x_ref[...]                                        # (TB, in_dim) bf16

    # fc1 + relu (bf16 MXU matmul, f32 accumulate / elementwise)
    h1 = jnp.dot(x, w1_ref[...], preferred_element_type=jnp.float32)
    h1 = jnp.maximum(h1 + b1_ref[...], 0.0)               # (TB, 128) f32

    # drop1: identity (eval mode)

    # fc2 + relu
    h2 = jnp.dot(h1.astype(jnp.bfloat16), w2_ref[...],
                 preferred_element_type=jnp.float32)
    h2 = jnp.maximum(h2 + b2_ref[...], 0.0)               # (TB, 256) f32

    # drop2: identity (eval mode)

    # fc3 + sigmoid: N=1 output, so skip the MXU and use VPU mul + lane reduce.
    logits = jnp.sum(h2 * w3_ref[...], axis=-1, keepdims=True) + b3_ref[...]
    o_ref[...] = jax.nn.sigmoid(logits).astype(o_ref.dtype)   # (TB, 1)


@functools.partial(jax.jit, static_argnames=("tile_b",))
def mlp3_forward(x, params, tile_b=512):
    """x: [B, in_dim] float32 -> [B, 1] float32."""
    w1, b1, w2, b2, w3, b3 = params
    B, in_dim = x.shape

    # Adaptive batch tile: big for throughput, clamped/8-aligned for small B.
    tb = max(8, (min(tile_b, _round_up(B, 8)) // 8) * 8)
    b_pad = _round_up(B, tb)
    if b_pad != B:
        x = jnp.pad(x, ((0, b_pad - B), (0, 0)))
    grid = (b_pad // tb,)

    # MXU-facing operands in bf16; fc3 row + biases stay f32.
    x_bf16 = x.astype(jnp.bfloat16)
    w1_bf16 = w1.astype(jnp.bfloat16)
    w2_bf16 = w2.astype(jnp.bfloat16)
    w3_row = w3.reshape(1, 256).astype(jnp.float32)

    flops = 2 * b_pad * (in_dim * 128 + 128 * 256 + 256)
    bytes_accessed = (
        b_pad * in_dim * 2            # x stream (bf16)
        + in_dim * 128 * 2 + 128 * 256 * 2 + 256 * 4   # weights
        + (128 + 256 + 1) * 4         # biases
        + b_pad * 4                   # output
    )

    out = pl.pallas_call(
        _mlp3_kernel,
        out_shape=jax.ShapeDtypeStruct((b_pad, 1), jnp.float32),
        grid_spec=pltpu.PrefetchScalarGridSpec(
            num_scalar_prefetch=0,
            grid=grid,
            in_specs=[
                pl.BlockSpec((tb, in_dim), lambda i: (i, 0)),   # x tile (streams)
                pl.BlockSpec((in_dim, 128), lambda i: (0, 0)),  # w1 (resident)
                pl.BlockSpec((1, 128), lambda i: (0, 0)),       # b1
                pl.BlockSpec((128, 256), lambda i: (0, 0)),     # w2 (resident)
                pl.BlockSpec((1, 256), lambda i: (0, 0)),       # b2
                pl.BlockSpec((1, 256), lambda i: (0, 0)),       # w3 row
                pl.BlockSpec((1, 1), lambda i: (0, 0)),         # b3
            ],
            out_specs=pl.BlockSpec((tb, 1), lambda i: (i, 0)),
        ),
        compiler_params=pltpu.CompilerParams(
            dimension_semantics=("parallel",),
            vmem_limit_bytes=32 * 1024 * 1024,
        ),
        cost_estimate=pl.CostEstimate(
            flops=flops,
            transcendentals=b_pad,
            bytes_accessed=bytes_accessed,
        ),
    )(x_bf16, w1_bf16, b1, w2_bf16, b2, w3_row, b3)

    return out[:B]


def init_mlp3_params(key, in_dim):
    """Deterministic init matching nn.Linear's U(-1/sqrt(fan_in), 1/sqrt(fan_in)).

    Weights are stored transposed ([in, out]) relative to PyTorch ([out, in]).
    Biases are stored as (1, out) so they are 2-D for the TPU kernel.
    """
    def linear(key, fan_in, fan_out):
        kw, kb = jax.random.split(key)
        bound = 1.0 / jnp.sqrt(jnp.float32(fan_in))
        w = jax.random.uniform(kw, (fan_in, fan_out), jnp.float32, -bound, bound)
        b = jax.random.uniform(kb, (1, fan_out), jnp.float32, -bound, bound)
        return w, b

    k1, k2, k3 = jax.random.split(key, 3)
    w1, b1 = linear(k1, in_dim, 128)
    w2, b2 = linear(k2, 128, 256)
    w3, b3 = linear(k3, 256, 1)
    return (w1, b1, w2, b2, w3, b3)


def _reference(x, params):
    """Pure-JAX f32 reference for correctness checking."""
    w1, b1, w2, b2, w3, b3 = params
    h = jnp.maximum(x @ w1 + b1, 0.0)
    h = jnp.maximum(h @ w2 + b2, 0.0)
    return jax.nn.sigmoid(h @ w3 + b3)


if __name__ == "__main__":
    key = jax.random.PRNGKey(0)
    kp, kx, kx2 = jax.random.split(key, 3)

    batch, in_dim = 8, 32
    params = init_mlp3_params(kp, in_dim)

    # Small sanity run (single grid step).
    x = jax.random.normal(kx, (batch, in_dim), dtype=jnp.float32)
    out = jax.block_until_ready(mlp3_forward(x, params))
    ref = _reference(x, params)
    assert out.shape == (batch, 1), out.shape
    # bf16 MXU inputs -> loosened tolerance vs the f32 reference.
    assert jnp.allclose(out, ref, atol=2e-2, rtol=2e-2), "mismatch vs reference"

    # Exercise multi-step grid + batch padding (B not divisible by tile).
    x2 = jax.random.normal(kx2, (200, in_dim), dtype=jnp.float32)
    out2 = jax.block_until_ready(mlp3_forward(x2, params, tile_b=64))
    ref2 = _reference(x2, params)
    assert out2.shape == (200, 1), out2.shape
    assert jnp.allclose(out2, ref2, atol=2e-2, rtol=2e-2), "mismatch vs reference (padded)"

    print("KERNEL_OK")
</pallas_src>

<mosaic_0001>
module attributes {stable_mosaic.version = 11 : i64} {
  func.func @_mlp3_kernel(%arg0: i32, %arg1: memref<8x32xbf16, #tpu.memory_space<vmem>>, %arg2: memref<32x128xbf16, #tpu.memory_space<vmem>>, %arg3: memref<1x128xf32, #tpu.memory_space<vmem>>, %arg4: memref<128x256xbf16, #tpu.memory_space<vmem>>, %arg5: memref<1x256xf32, #tpu.memory_space<vmem>>, %arg6: memref<1x256xf32, #tpu.memory_space<vmem>>, %arg7: memref<1x1xf32, #tpu.memory_space<vmem>>, %arg8: memref<8x1xf32, #tpu.memory_space<vmem>>) attributes {dimension_semantics = [#tpu.dimension_semantics<parallel>], iteration_bounds = array<i64: 1>, scalar_prefetch = 0 : i64, scratch_operands = 0 : i64, tpu.core_type = #tpu.core_type<tc>, window_params = [{transform_indices = @transform_0, window_bounds = array<i64: 8, 32>}, {pipeline_mode = #tpu.pipeline_mode<synchronous>, transform_indices = @transform_1, window_bounds = array<i64: 32, 128>}, {pipeline_mode = #tpu.pipeline_mode<synchronous>, transform_indices = @transform_2, window_bounds = array<i64: 1, 128>}, {pipeline_mode = #tpu.pipeline_mode<synchronous>, transform_indices = @transform_3, window_bounds = array<i64: 128, 256>}, {pipeline_mode = #tpu.pipeline_mode<synchronous>, transform_indices = @transform_4, window_bounds = array<i64: 1, 256>}, {pipeline_mode = #tpu.pipeline_mode<synchronous>, transform_indices = @transform_5, window_bounds = array<i64: 1, 256>}, {pipeline_mode = #tpu.pipeline_mode<synchronous>, transform_indices = @transform_6, window_bounds = array<i64: 1, 1>}, {transform_indices = @transform_7, window_bounds = array<i64: 8, 1>}]} {
    %c0 = arith.constant 0 : index
    %c0_0 = arith.constant 0 : index
    %0 = vector.load %arg1[%c0, %c0_0] : memref<8x32xbf16, #tpu.memory_space<vmem>>, vector<8x32xbf16>
    %c0_1 = arith.constant 0 : index
    %c0_2 = arith.constant 0 : index
    %1 = vector.load %arg2[%c0_1, %c0_2] : memref<32x128xbf16, #tpu.memory_space<vmem>>, vector<32x128xbf16>
    %cst = arith.constant dense<0.000000e+00> : vector<8x128xf32>
    %2 = tpu.matmul %0, %1, %cst {dimension_numbers = #tpu.dot_dimension_numbers<[1], [0], [0], [1], [0, 0, 1, 1], [], []>} : vector<8x32xbf16>, vector<32x128xbf16>, vector<8x128xf32> -> vector<8x128xf32>
    %c0_3 = arith.constant 0 : index
    %c0_4 = arith.constant 0 : index
    %3 = vector.load %arg3[%c0_3, %c0_4] : memref<1x128xf32, #tpu.memory_space<vmem>>, vector<1x128xf32>
    %4 = vector.broadcast %3 : vector<1x128xf32> to vector<8x128xf32>
    %5 = arith.addf %2, %4 : vector<8x128xf32>
    %cst_5 = arith.constant 0.000000e+00 : f32
    %6 = vector.broadcast %cst_5 : f32 to vector<8x128xf32>
    %7 = arith.maximumf %5, %6 : vector<8x128xf32>
    %8 = arith.truncf %7 : vector<8x128xf32> to vector<8x128xbf16>
    %c0_6 = arith.constant 0 : index
    %c0_7 = arith.constant 0 : index
    %9 = vector.load %arg4[%c0_6, %c0_7] : memref<128x256xbf16, #tpu.memory_space<vmem>>, vector<128x256xbf16>
    %cst_8 = arith.constant dense<0.000000e+00> : vector<8x256xf32>
    %10 = tpu.matmul %8, %9, %cst_8 {dimension_numbers = #tpu.dot_dimension_numbers<[1], [0], [0], [1], [0, 0, 1, 1], [], []>} : vector<8x128xbf16>, vector<128x256xbf16>, vector<8x256xf32> -> vector<8x256xf32>
    %c0_9 = arith.constant 0 : index
    %c0_10 = arith.constant 0 : index
    %11 = vector.load %arg5[%c0_9, %c0_10] : memref<1x256xf32, #tpu.memory_space<vmem>>, vector<1x256xf32>
    %12 = vector.broadcast %11 : vector<1x256xf32> to vector<8x256xf32>
    %13 = arith.addf %10, %12 : vector<8x256xf32>
    %cst_11 = arith.constant 0.000000e+00 : f32
    %14 = vector.broadcast %cst_11 : f32 to vector<8x256xf32>
    %15 = arith.maximumf %13, %14 : vector<8x256xf32>
    %c0_12 = arith.constant 0 : index
    %c0_13 = arith.constant 0 : index
    %16 = vector.load %arg6[%c0_12, %c0_13] : memref<1x256xf32, #tpu.memory_space<vmem>>, vector<1x256xf32>
    %17 = vector.broadcast %16 : vector<1x256xf32> to vector<8x256xf32>
    %18 = arith.mulf %15, %17 : vector<8x256xf32>
    %cst_14 = arith.constant dense<0.000000e+00> : vector<8xf32>
    %19 = vector.multi_reduction <add>, %18, %cst_14 [1] : vector<8x256xf32> to vector<8xf32>
    %20 = vector.shape_cast %19 : vector<8xf32> to vector<8x1xf32>
    %c0_15 = arith.constant 0 : index
    %c0_16 = arith.constant 0 : index
    %21 = vector.load %arg7[%c0_15, %c0_16] : memref<1x1xf32, #tpu.memory_space<vmem>>, vector<1x1xf32>
    %22 = vector.broadcast %21 : vector<1x1xf32> to vector<8x1xf32>
    %23 = arith.addf %20, %22 : vector<8x1xf32>
    %24 = arith.negf %23 : vector<8x1xf32>
    %25 = math.exp %24 : vector<8x1xf32>
    %cst_17 = arith.constant 1.000000e+00 : f32
    %26 = vector.broadcast %cst_17 : f32 to vector<8x1xf32>
    %27 = arith.addf %26, %25 : vector<8x1xf32>
    %28 = arith.divf %26, %27 : vector<8x1xf32>
    %c0_18 = arith.constant 0 : index
    %c0_19 = arith.constant 0 : index
    %29 = vector.load %arg8[%c0_18, %c0_19] : memref<8x1xf32, #tpu.memory_space<vmem>>, vector<8x1xf32>
    tpu.vector_store %arg8[%c0_18, %c0_19], %28 {strides = array<i32>} : memref<8x1xf32, #tpu.memory_space<vmem>>, vector<8x1xf32>,
    return
  }
  func.func @transform_0(%arg0: i32) -> (i32, i32) {
    %c0_i32 = arith.constant 0 : i32
    %c0_i32_0 = arith.constant 0 : i32
    return %arg0, %c0_i32 : i32, i32
  }
  func.func @transform_1(%arg0: i32) -> (i32, i32) {
    %c0_i32 = arith.constant 0 : i32
    %c0_i32_0 = arith.constant 0 : i32
    %c0_i32_1 = arith.constant 0 : i32
    return %c0_i32, %c0_i32_0 : i32, i32
  }
  func.func @transform_2(%arg0: i32) -> (i32, i32) {
    %c0_i32 = arith.constant 0 : i32
    %c0_i32_0 = arith.constant 0 : i32
    %c0_i32_1 = arith.constant 0 : i32
    return %c0_i32, %c0_i32_0 : i32, i32
  }
  func.func @transform_3(%arg0: i32) -> (i32, i32) {
    %c0_i32 = arith.constant 0 : i32
    %c0_i32_0 = arith.constant 0 : i32
    %c0_i32_1 = arith.constant 0 : i32
    return %c0_i32, %c0_i32_0 : i32, i32
  }
  func.func @transform_4(%arg0: i32) -> (i32, i32) {
    %c0_i32 = arith.constant 0 : i32
    %c0_i32_0 = arith.constant 0 : i32
    %c0_i32_1 = arith.constant 0 : i32
    return %c0_i32, %c0_i32_0 : i32, i32
  }
  func.func @transform_5(%arg0: i32) -> (i32, i32) {
    %c0_i32 = arith.constant 0 : i32
    %c0_i32_0 = arith.constant 0 : i32
    %c0_i32_1 = arith.constant 0 : i32
    return %c0_i32, %c0_i32_0 : i32, i32
  }
  func.func @transform_6(%arg0: i32) -> (i32, i32) {
    %c0_i32 = arith.constant 0 : i32
    %c0_i32_0 = arith.constant 0 : i32
    %c0_i32_1 = arith.constant 0 : i32
    return %c0_i32, %c0_i32_0 : i32, i32
  }
  func.func @transform_7(%arg0: i32) -> (i32, i32) {
    %c0_i32 = arith.constant 0 : i32
    %c0_i32_0 = arith.constant 0 : i32
    return %arg0, %c0_i32 : i32, i32
  }
}

</mosaic_0001>

<llo_original>
// kernel: mlp3_forward.1
$region0: #{mlp3_forward.1}
  #allocation0 [shape = 'u32[]', space=smem, size = 0x4, offset = 0x4, fixed_abs, tag = 'smem constant byte address 0x4 - core index']
  #allocation1 [shape = 'u32[72,128]{1,0:T(1,128)}', space=vmem, size = 0x9000, scoped, tag = 'internal scratch']
  #allocation2 [shape = 'f32[1,1]{1,0:T(1,128)S(1)}', space=vmem, size = 0x200, scoped, tag = 'scoped memory for mlp3_forward.1']
  %s0 = inlined_call_operand.vmem [shape: bf16[8,32], index: 0, kind: input, shape index: {}]
  %s1 = inlined_call_operand.vmem [shape: bf16[32,128], index: 1, kind: input, shape index: {}]
  %s2 = inlined_call_operand.vmem [shape: f32[1,128], index: 2, kind: input, shape index: {}]
  %s3 = inlined_call_operand.vmem [shape: bf16[128,256], index: 3, kind: input, shape index: {}]
  %s4 = inlined_call_operand.vmem [shape: f32[1,256], index: 4, kind: input, shape index: {}]
  %s5 = inlined_call_operand.vmem [shape: f32[1,256], index: 5, kind: input, shape index: {}]
  %s6 = inlined_call_operand.<no memory space> [shape: f32[1,1], index: 6, kind: input, shape index: {}]
  %s7 = inlined_call_operand.vmem [shape: f32[8,1], index: 7, kind: output, shape index: {}]
  %s8 = sld [smem:[#allocation0]]
  $region38: #{mlp3_forward.1} parent=0
    _
  %s10 = ssub.s32 1, %s8
  %s11 = scalar_select 0, %s10, %s8
  %v12 = vstv %s6
  %13 = vst [vmem:[#allocation2] sm:$0x1] %v12
  // Predicated region
  $region2: #{mlp3_forward.1} parent=0 // pred_check
    _
  $region3: #{mlp3_forward.1} parent=0 // pred_check_branch
    %15 = sbr.rel (0) target = $region5
  $region4: #{mlp3_forward.1} parent=0 // pred_region
    _
  $region5: #{mlp3_forward.1} parent=0 // pred_fallthru
    _
  // Predicated region
  $region6: #{mlp3_forward.1} parent=0 // pred_check
    _
  $region7: #{mlp3_forward.1} parent=0 // pred_check_branch
    %17 = sbr.rel (0) target = $region9
  $region8: #{mlp3_forward.1} parent=0 // pred_region
    _
  $region9: #{mlp3_forward.1} parent=0 // pred_fallthru
    _
  // Predicated region
  $region10: #{mlp3_forward.1} parent=0 // pred_check
    _
  $region11: #{mlp3_forward.1} parent=0 // pred_check_branch
    %19 = sbr.rel (0) target = $region13
  $region12: #{mlp3_forward.1} parent=0 // pred_region
    _
  $region13: #{mlp3_forward.1} parent=0 // pred_fallthru
    _
  // Predicated region
  $region14: #{mlp3_forward.1} parent=0 // pred_check
    _
  $region15: #{mlp3_forward.1} parent=0 // pred_check_branch
    %21 = sbr.rel (0) target = $region17
  $region16: #{mlp3_forward.1} parent=0 // pred_region
    _
  $region17: #{mlp3_forward.1} parent=0 // pred_fallthru
    _
  // Predicated region
  $region18: #{mlp3_forward.1} parent=0 // pred_check
    _
  $region19: #{mlp3_forward.1} parent=0 // pred_check_branch
    %23 = sbr.rel (0) target = $region21
  $region20: #{mlp3_forward.1} parent=0 // pred_region
    _
  $region21: #{mlp3_forward.1} parent=0 // pred_fallthru
    _
  // Predicated region
  $region22: #{mlp3_forward.1} parent=0 // pred_check
    _
  $region23: #{mlp3_forward.1} parent=0 // pred_check_branch
    %25 = sbr.rel (0) target = $region25
  $region24: #{mlp3_forward.1} parent=0 // pred_region
    _
  $region25: #{mlp3_forward.1} parent=0 // pred_fallthru
    _
  // Predicated region
  $region26: #{mlp3_forward.1} parent=0 // pred_check
    _
  $region27: #{mlp3_forward.1} parent=0 // pred_check_branch
    %27 = sbr.rel (0) target = $region29
  $region28: #{mlp3_forward.1} parent=0 // pred_region
    _
  $region29: #{mlp3_forward.1} parent=0 // pred_fallthru
    _
  %v29 = vld [vmem:[%s0] sm:$0xf]
  %v30 = vld [vmem:[%s1] sm:$0xf]
  %v31 = vld [vmem:[%s1 + $0x4] sm:$0xf]
  %v32 = vld [vmem:[%s1 + $0x8] sm:$0xf]
  %v33 = vld [vmem:[%s1 + $0xc] sm:$0xf]
  %v34 = vld [vmem:[%s2] sm:$0x1]
  %v36 = vperm.slane %v34, 0
  %v42 = vunpack.c.l.b16 %v30
  %v43 = vunpack.c.l.b16 %v31
  %v44 = vunpack.c.l.b16 %v32
  %v45 = vunpack.c.l.b16 %v33
  %v46 = vpack.c.b16 %v43, %v42
  %v47 = vpack.c.b16 %v45, %v44
  %vm50 = vcmask 261120
  %v52 = vsel %vm50, %v29, 0
  %54 = vmatpush.bf16.msra.mxu0 0
  %55 = vmatpush.bf16.msra.mxu0 0
  %56 = vmatpush.bf16.msra.mxu0 0
  %57 = vmatpush.bf16.msra.mxu0 0
  %58 = vmatpush.bf16.msra.mxu0 0
  %59 = vmatpush.bf16.msra.mxu0 0
  %60 = vmatpush.bf16.msra.mxu0 %v47
  %61 = vmatpush.bf16.msra.mxu0 %v46
  %62 = vmatmul.bf16.gmra.mxu0 %v52
  %v63 = vpop.f32.mrf.mxu0
  %v64 = vadd.f32 %v36, %v63
  %v65 = vpop.f32.mrf.mxu0
  %66 = vdwg.mxu0
  %v67 = vmax.f32 %v64, 0.0
  %v68 = vpack.c.bf16 %v67, %v67
  %v69 = vld [vmem:[%s3] sm:$0xff]
  %v70 = vld [vmem:[%s3 + $0x8] sm:$0xff]
  %v71 = vld [vmem:[%s3 + $0x10] sm:$0xff]
  %v72 = vld [vmem:[%s3 + $0x18] sm:$0xff]
  %v73 = vld [vmem:[%s3 + $0x20] sm:$0xff]
  %v74 = vld [vmem:[%s3 + $0x28] sm:$0xff]
  %v75 = vld [vmem:[%s3 + $0x30] sm:$0xff]
  %v76 = vld [vmem:[%s3 + $0x38] sm:$0xff]
  %v77 = vld [vmem:[%s3 + $0x40] sm:$0xff]
  %v78 = vld [vmem:[%s3 + $0x48] sm:$0xff]
  %v79 = vld [vmem:[%s3 + $0x50] sm:$0xff]
  %v80 = vld [vmem:[%s3 + $0x58] sm:$0xff]
  %v81 = vld [vmem:[%s3 + $0x60] sm:$0xff]
  %v82 = vld [vmem:[%s3 + $0x68] sm:$0xff]
  %v83 = vld [vmem:[%s3 + $0x70] sm:$0xff]
  %v84 = vld [vmem:[%s3 + $0x78] sm:$0xff]
  %v85 = vld [vmem:[%s4] sm:$0x3]
  %v87 = vperm.slane %v85, 0
  %v88 = vperm.slane %v85, 1
  %v107 = vunpack.c.l.b16 %v69
  %v108 = vunpack.c.h.b16 %v69
  %v109 = vunpack.c.l.b16 %v70
  %v110 = vunpack.c.h.b16 %v70
  %v111 = vunpack.c.l.b16 %v71
  %v112 = vunpack.c.h.b16 %v71
  %v113 = vunpack.c.l.b16 %v72
  %v114 = vunpack.c.h.b16 %v72
  %v115 = vunpack.c.l.b16 %v73
  %v116 = vunpack.c.h.b16 %v73
  %v117 = vunpack.c.l.b16 %v74
  %v118 = vunpack.c.h.b16 %v74
  %v119 = vunpack.c.l.b16 %v75
  %v120 = vunpack.c.h.b16 %v75
  %v121 = vunpack.c.l.b16 %v76
  %v122 = vunpack.c.h.b16 %v76
  %v123 = vunpack.c.l.b16 %v77
  %v124 = vunpack.c.h.b16 %v77
  %v125 = vunpack.c.l.b16 %v78
  %v126 = vunpack.c.h.b16 %v78
  %v127 = vunpack.c.l.b16 %v79
  %v128 = vunpack.c.h.b16 %v79
  %v129 = vunpack.c.l.b16 %v80
  %v130 = vunpack.c.h.b16 %v80
  %v131 = vunpack.c.l.b16 %v81
  %v132 = vunpack.c.h.b16 %v81
  %v133 = vunpack.c.l.b16 %v82
  %v134 = vunpack.c.h.b16 %v82
  %v135 = vunpack.c.l.b16 %v83
  %v136 = vunpack.c.h.b16 %v83
  %v137 = vunpack.c.l.b16 %v84
  %v138 = vunpack.c.h.b16 %v84
  %v139 = vpack.c.b16 %v109, %v107
  %v140 = vpack.c.b16 %v110, %v108
  %v141 = vpack.c.b16 %v113, %v111
  %v142 = vpack.c.b16 %v114, %v112
  %v143 = vpack.c.b16 %v117, %v115
  %v144 = vpack.c.b16 %v118, %v116
  %v145 = vpack.c.b16 %v121, %v119
  %v146 = vpack.c.b16 %v122, %v120
  %v147 = vpack.c.b16 %v125, %v123
  %v148 = vpack.c.b16 %v126, %v124
  %v149 = vpack.c.b16 %v129, %v127
  %v150 = vpack.c.b16 %v130, %v128
  %v151 = vpack.c.b16 %v133, %v131
  %v152 = vpack.c.b16 %v134, %v132
  %v153 = vpack.c.b16 %v137, %v135
  %v154 = vpack.c.b16 %v138, %v136
  %171 = vmatpush.bf16.msra.mxu0 %v153
  %172 = vmatpush.bf16.msra.mxu0 %v151
  %173 = vmatpush.bf16.msra.mxu0 %v149
  %174 = vmatpush.bf16.msra.mxu0 %v147
  %175 = vmatpush.bf16.msra.mxu0 %v145
  %176 = vmatpush.bf16.msra.mxu0 %v143
  %177 = vmatpush.bf16.msra.mxu0 %v141
  %178 = vmatpush.bf16.msra.mxu0 %v139
  %179 = vmatmul.bf16.gmra.mxu0 %v68
  %v180 = vpop.f32.mrf.mxu0
  %v181 = vadd.f32 %v87, %v180
  %v182 = vpop.f32.mrf.mxu0
  %183 = vdwg.mxu0
  %184 = vmatpush.bf16.msra.mxu0 %v154
  %185 = vmatpush.bf16.msra.mxu0 %v152
  %186 = vmatpush.bf16.msra.mxu0 %v150
  %187 = vmatpush.bf16.msra.mxu0 %v148
  %188 = vmatpush.bf16.msra.mxu0 %v146
  %189 = vmatpush.bf16.msra.mxu0 %v144
  %190 = vmatpush.bf16.msra.mxu0 %v142
  %191 = vmatpush.bf16.msra.mxu0 %v140
  %192 = vmatmul.bf16.gmra.mxu0 %v68
  %v193 = vpop.f32.mrf.mxu0
  %v194 = vadd.f32 %v88, %v193
  %v195 = vpop.f32.mrf.mxu0
  %196 = vdwg.mxu0
  %v197 = vmax.f32 %v181, 0.0
  %v198 = vmax.f32 %v194, 0.0
  %v199 = vld [vmem:[%s5] sm:$0x3]
  %v201 = vperm.slane %v199, 0
  %v202 = vperm.slane %v199, 1
  %v205 = vmul.f32 %v197, %v201
  %v206 = vmul.f32 %v198, %v202
  %v207 = vadd.f32 %v205, %v206
  %208 = vadd.xlane.f32.xlu0 %v207
  %v209 = vpop.xlane.xlu0 %208
  %v210 = vld [vmem:[#allocation2] sm:$0x1]
  %v212 = vperm.slane %v210, 0
  %v214 = vadd.f32 %v209, %v212
  %v215 = vxor.u32 %v214, 2147483648
  %v216 = vmul.f32 %v215, 1.442695
  %v217 = vpow.pop %v216
  %v218 = vadd.f32 %v217, 1.0
  %v219 = vrcp.pop %v218
  %v220 = vmul.f32 %v218, %v219
  %v221 = vsub.f32 1.0, %v220
  %v222 = vmul.f32 %v219, %v221
  %v223 = vadd.f32 %v219, %v222
  %vm224 = vweird.f32 %v218
  %vm225 = vweird.f32 %v219
  %vm226 = vmor %vm224, %vm225
  %v227 = vsel %vm226, %v219, %v223
  %v228 = vand.u32 2147483647, %v218
  %vm229 = vcmp.eq.f32.partialorder %v228, 8.507059e+37
  %v230 = vand.u32 %v218, 2147483648
  %v231 = vor.u32 1.1754944e-38, %v230
  %v232 = vsel %vm229, %v231, %v227
  %v233 = vmul.f32 1.0, %v232
  %vm234 = vcmask 7168
  %235 = vst.msk [vmem:[%s7] sm:$0xff] %vm234, %v233
  // Predicated region
  $region30: #{mlp3_forward.1} parent=0 // pred_check
    _
  $region31: #{mlp3_forward.1} parent=0 // pred_check_branch
    %237 = sbr.rel (0) target = $region33
  $region32: #{mlp3_forward.1} parent=0 // pred_region
    _
  $region33: #{mlp3_forward.1} parent=0 // pred_fallthru
    _
  // Predicated region
  $region34: #{mlp3_forward.1} parent=0 // pred_check
    _
  $region35: #{mlp3_forward.1} parent=0 // pred_check_branch
    %239 = sbr.rel (0) target = $region37
  $region36: #{mlp3_forward.1} parent=0 // pred_region
    _
  $region37: #{mlp3_forward.1} parent=0 // pred_fallthru
    _

</llo_original>
